<compile_context>
chip_gen: v7x
topology: tpu7x:2x2x1
jax: 0.10.0
libtpu: 0.0.40
codegen_flags: <defaults>
</compile_context>

<pallas_src>
import functools

import jax
import jax.numpy as jnp
import numpy as np
from jax.experimental import pallas as pl
from jax.experimental.pallas import tpu as pltpu

EPS = 1e-5  # torch.nn.LayerNorm default
_VMEM_LIMIT_BYTES = 32 * 1024 * 1024  # raise v5e's 16 MiB default; <= v7x physical


def _round_up(v, m):
    return (v + m - 1) // m * m


def _choose_tile_m(m_rows, tile_m_cap, min_grid_steps=2):
    """Row-tile size: multiple of 128, as large as the cap allows, but keeping at
    least `min_grid_steps` grid steps when there is enough data so the 'parallel'
    grid axis can be sharded across TensorCores (v7x megacore)."""
    tile_m_cap = max(128, _round_up(tile_m_cap, 128))
    if m_rows <= 128:
        return 128
    steps = max(pl.cdiv(m_rows, tile_m_cap), min_grid_steps)
    tm = _round_up(pl.cdiv(m_rows, steps), 128)
    return min(tm, tile_m_cap)


def _layernorm_feature_major(h, gamma, beta):
    """LayerNorm over the feature axis (axis 0) of a (D, tile_m) f32 tile.

    Two-pass biased variance (torch parity); sublane reductions are cheap here.
    """
    mu = jnp.mean(h, axis=0, keepdims=True)            # (1, tm)
    d = h - mu
    var = jnp.mean(d * d, axis=0, keepdims=True)       # (1, tm)
    return d * jax.lax.rsqrt(var + EPS) * gamma + beta


def mlp_head_kernel(x_ref, w1_ref, w2_ref, w3_ref, vec_ref, o_ref,
                    *, d_h1, d_h2, d_out):
    """Fused MLP head in feature-major layout.

    x_ref : (d_in, tile_m)   compute dtype (bf16 or f32), rows on lanes
    wK_ref: (d_outK, d_inK)  pre-transposed weights, compute dtype
    vec_ref: (3*d_h1 + 3*d_h2 + d_out, 1) f32  packed [b1,g1,be1,b2,g2,be2,b3]
    o_ref : (d_out, tile_m)  compute dtype, lane-dense output slab
    """
    f32 = jnp.float32
    x = x_ref[...]
    w1 = w1_ref[...]
    w2 = w2_ref[...]
    w3 = w3_ref[...]
    vec = vec_ref[...]                                  # (K, 1) f32

    off = 0
    b1 = vec[off:off + d_h1]; off += d_h1
    g1 = vec[off:off + d_h1]; off += d_h1
    be1 = vec[off:off + d_h1]; off += d_h1
    b2 = vec[off:off + d_h2]; off += d_h2
    g2 = vec[off:off + d_h2]; off += d_h2
    be2 = vec[off:off + d_h2]; off += d_h2
    b3 = vec[off:off + d_out]

    # hidden layer 1: Linear -> LayerNorm -> ReLU   (all (D, tile_m) tiles)
    h = jnp.dot(w1, x, preferred_element_type=f32) + b1
    h = _layernorm_feature_major(h, g1, be1)
    h = jnp.maximum(h, 0.0)

    # hidden layer 2
    h = jnp.dot(w2, h.astype(w2.dtype), preferred_element_type=f32) + b2
    h = _layernorm_feature_major(h, g2, be2)
    h = jnp.maximum(h, 0.0)

    # output projection
    h = jnp.dot(w3, h.astype(w3.dtype), preferred_element_type=f32) + b3

    o_ref[...] = h.astype(o_ref.dtype)                  # unmasked, lane-dense store


def pack_params_for_kernel(params, compute_dtype=jnp.bfloat16):
    """Convert natural (in,out)-layout params into the kernel's packed layout.
    Call once and cache (hoisted out of the per-call path)."""
    cd = compute_dtype
    w1t = jnp.asarray(params["w1"]).T.astype(cd)        # (d_h1, d_in)
    w2t = jnp.asarray(params["w2"]).T.astype(cd)        # (d_h2, d_h1)
    w3t = jnp.asarray(params["w3"]).T.astype(cd)        # (d_out, d_h2)

    # Feature dims must stay sublane-aligned for the packed-vec slicing below.
    for d in (w1t.shape[0], w1t.shape[1], w2t.shape[0], w3t.shape[0]):
        assert d % 8 == 0 or d == w3t.shape[0], f"feature dim {d} not sublane friendly"

    def col(v):
        return jnp.asarray(v, jnp.float32).reshape(-1, 1)

    vec = jnp.concatenate(
        [col(params["b1"]), col(params["g1"]), col(params["be1"]),
         col(params["b2"]), col(params["g2"]), col(params["be2"]),
         col(params["b3"])], axis=0)                    # (3*d_h1+3*d_h2+d_out, 1)
    return {"w1t": w1t, "w2t": w2t, "w3t": w3t, "vec": vec}


def mlp_head_pallas_fm(x_t, kparams, *, tile_m=16384, out_dtype=None,
                       interpret=False):
    """Feature-major fast path (zero wrapper-side copies).

    x_t: [d_in, M] (rows on the last / lane axis).  Returns [d_out, M]."""
    d_in, M = x_t.shape
    d_h1 = kparams["w1t"].shape[0]
    d_h2 = kparams["w2t"].shape[0]
    d_out = kparams["w3t"].shape[0]
    wd = kparams["w1t"].dtype
    if out_dtype is None:
        out_dtype = wd

    x_t = x_t.astype(wd)
    tm = _choose_tile_m(M, tile_m)
    grid = (pl.cdiv(M, tm),)   # ragged last block handled by Pallas (no pad pass)

    kernel = functools.partial(mlp_head_kernel, d_h1=d_h1, d_h2=d_h2, d_out=d_out)

    return pl.pallas_call(
        kernel,
        out_shape=jax.ShapeDtypeStruct((d_out, M), out_dtype),
        grid_spec=pltpu.PrefetchScalarGridSpec(
            num_scalar_prefetch=0,
            grid=grid,
            in_specs=[
                pl.BlockSpec((d_in, tm), lambda i: (0, i)),
                pl.BlockSpec(kparams["w1t"].shape, lambda i: (0, 0)),
                pl.BlockSpec(kparams["w2t"].shape, lambda i: (0, 0)),
                pl.BlockSpec(kparams["w3t"].shape, lambda i: (0, 0)),
                pl.BlockSpec(kparams["vec"].shape, lambda i: (0, 0)),
            ],
            out_specs=pl.BlockSpec((d_out, tm), lambda i: (0, i)),
        ),
        compiler_params=pltpu.CompilerParams(
            dimension_semantics=("parallel",),
            vmem_limit_bytes=_VMEM_LIMIT_BYTES),
        interpret=interpret,
    )(x_t, kparams["w1t"], kparams["w2t"], kparams["w3t"], kparams["vec"])


def mlp_head_pallas(x2d, kparams, *, tile_m=16384, out_dtype=None,
                    interpret=False):
    """Row-major convenience wrapper: x2d [M, d_in] -> [M, d_out].

    Does a single cast+transpose copy (with a <=127-row lane pad fused into it)
    to present the feature-major slab; callers that can keep activations
    feature-major should use mlp_head_pallas_fm directly and skip this copy."""
    M, d_in = x2d.shape
    wd = kparams["w1t"].dtype
    if out_dtype is None:
        out_dtype = wd

    m_pad = _round_up(max(M, 1), 128)
    x_cd = x2d.astype(wd)
    if m_pad != M:
        x_cd = jnp.pad(x_cd, ((0, m_pad - M), (0, 0)))   # fuses with the transpose
    x_t = x_cd.T                                         # (d_in, m_pad)

    out_t = mlp_head_pallas_fm(x_t, kparams, tile_m=tile_m,
                               out_dtype=out_dtype, interpret=interpret)
    return out_t[:, :M].T                                # back to row-major [M, d_out]


# Jitted entry points so the wrapper-side layout plumbing fuses with XLA.
mlp_head_pallas_jit = jax.jit(
    mlp_head_pallas, static_argnames=("tile_m", "out_dtype", "interpret"))
mlp_head_pallas_fm_jit = jax.jit(
    mlp_head_pallas_fm, static_argnames=("tile_m", "out_dtype", "interpret"))


def mlp_head_reference(x2d, params, compute_dtype=jnp.float32):
    """Pure-JAX reference with PyTorch semantics (two-pass biased-var LayerNorm).
    compute_dtype mirrors the kernel's matmul-operand dtype (f32 or bf16)."""
    f32 = jnp.float32
    cd = compute_dtype

    def ln(h, g, b):
        mu = jnp.mean(h, axis=-1, keepdims=True)
        var = jnp.mean((h - mu) ** 2, axis=-1, keepdims=True)
        return (h - mu) * jax.lax.rsqrt(var + EPS) * g + b

    h = jnp.dot(x2d.astype(cd), params["w1"].astype(cd),
                preferred_element_type=f32) + params["b1"]
    h = ln(h, params["g1"], params["be1"])
    h = jnp.maximum(h, 0.0)
    h = jnp.dot(h.astype(cd), params["w2"].astype(cd),
                preferred_element_type=f32) + params["b2"]
    h = ln(h, params["g2"], params["be2"])
    h = jnp.maximum(h, 0.0)
    h = jnp.dot(h.astype(cd), params["w3"].astype(cd),
                preferred_element_type=f32) + params["b3"]
    return h


def make_params(key, input_dim, hidden_dim, output_dim):
    """Deterministic synthetic parameters. Linear weights stored as (in, out) so the
    math is x @ W + b, equivalent to PyTorch's x @ W_torch.T + b."""
    k1, k2, k3, k4 = jax.random.split(key, 4)

    def lin(kk, din, dout):
        bound = 1.0 / np.sqrt(din)  # torch.nn.Linear default init scale
        w = jax.random.uniform(kk, (din, dout), jnp.float32, -bound, bound)
        b = jax.random.uniform(jax.random.fold_in(kk, 1), (1, dout),
                               jnp.float32, -bound, bound)
        return w, b

    w1, b1 = lin(k1, input_dim, hidden_dim)
    w2, b2 = lin(k2, hidden_dim, hidden_dim)
    w3, b3 = lin(k3, hidden_dim, output_dim)
    kg1, kg2 = jax.random.split(k4)
    # non-trivial affine LN params so the gamma/beta broadcast path is exercised
    g1 = 1.0 + 0.1 * jax.random.normal(kg1, (1, hidden_dim), jnp.float32)
    be1 = 0.1 * jax.random.normal(jax.random.fold_in(kg1, 1), (1, hidden_dim), jnp.float32)
    g2 = 1.0 + 0.1 * jax.random.normal(kg2, (1, hidden_dim), jnp.float32)
    be2 = 0.1 * jax.random.normal(jax.random.fold_in(kg2, 1), (1, hidden_dim), jnp.float32)
    return {"w1": w1, "b1": b1, "g1": g1, "be1": be1,
            "w2": w2, "b2": b2, "g2": g2, "be2": be2,
            "w3": w3, "b3": b3}


if __name__ == "__main__":
    input_dim, hidden_dim, output_dim = 16, 32, 8
    key = jax.random.PRNGKey(0)
    kx, kp, kx2, kx3 = jax.random.split(key, 4)
    params = make_params(kp, input_dim, hidden_dim, output_dim)

    # Pack once and reuse (hoisted out of the per-call path).
    kparams_f32 = pack_params_for_kernel(params, jnp.float32)
    kparams_bf16 = pack_params_for_kernel(params, jnp.bfloat16)   # default stream dtype

    # --- Case 1: small shape, f32 compute path, row-major wrapper (tight tolerance) ---
    batch, seq = 2, 8
    x = jax.random.normal(kx, (batch, seq, input_dim), jnp.float32)
    x2d = x.reshape(batch * seq, input_dim)

    out2d = mlp_head_pallas_jit(x2d, kparams_f32, out_dtype=jnp.float32)
    out = out2d.reshape(batch, seq, output_dim)
    jax.block_until_ready(out)

    ref = mlp_head_reference(x2d, params).reshape(batch, seq, output_dim)
    assert np.allclose(np.asarray(out), np.asarray(ref), atol=1e-4, rtol=1e-4)

    # --- Case 2: larger row count, bf16 streams (x + output), 2-step parallel grid ---
    batch2, seq2 = 4, 300                      # 1200 rows -> lane-pad to 1280, 2 tiles
    x_big = jax.random.normal(kx2, (batch2, seq2, input_dim), jnp.float32)
    xb2d = x_big.reshape(batch2 * seq2, input_dim)

    out_bf = mlp_head_pallas_jit(xb2d, kparams_bf16)
    jax.block_until_ready(out_bf)

    ref_bf = mlp_head_reference(xb2d, params, compute_dtype=jnp.bfloat16)
    assert np.allclose(np.asarray(out_bf.astype(jnp.float32)), np.asarray(ref_bf),
                       atol=3e-2, rtol=3e-2)

    # --- Case 3: feature-major fast path (no wrapper transposes at all) ---
    M_fm = 1280
    x_fm = jax.random.normal(kx3, (input_dim, M_fm), jnp.float32).astype(jnp.bfloat16)
    out_fm = mlp_head_pallas_fm_jit(x_fm, kparams_bf16)          # (d_out, M_fm)
    jax.block_until_ready(out_fm)

    ref_fm = mlp_head_reference(x_fm.astype(jnp.float32).T, params,
                                compute_dtype=jnp.bfloat16)
    assert np.allclose(np.asarray(out_fm.astype(jnp.float32)).T, np.asarray(ref_fm),
                       atol=3e-2, rtol=3e-2)

    # TODO(synk): dropout (p>0, training mode) omitted — all dropout probs are 0 in this config.
    print("KERNEL_OK")
</pallas_src>

<mosaic_0001>
module attributes {stable_mosaic.version = 11 : i64} {
  func.func @mlp_head_kernel(%arg0: i32, %arg1: memref<16x128xf32, #tpu.memory_space<vmem>>, %arg2: memref<32x16xf32, #tpu.memory_space<vmem>>, %arg3: memref<32x32xf32, #tpu.memory_space<vmem>>, %arg4: memref<8x32xf32, #tpu.memory_space<vmem>>, %arg5: memref<200x1xf32, #tpu.memory_space<vmem>>, %arg6: memref<8x128xf32, #tpu.memory_space<vmem>>) attributes {dimension_semantics = [#tpu.dimension_semantics<parallel>], iteration_bounds = array<i64: 1>, scalar_prefetch = 0 : i64, scratch_operands = 0 : i64, tpu.core_type = #tpu.core_type<tc>, window_params = [{transform_indices = @transform_0, window_bounds = array<i64: 16, 128>}, {pipeline_mode = #tpu.pipeline_mode<synchronous>, transform_indices = @transform_1, window_bounds = array<i64: 32, 16>}, {pipeline_mode = #tpu.pipeline_mode<synchronous>, transform_indices = @transform_2, window_bounds = array<i64: 32, 32>}, {pipeline_mode = #tpu.pipeline_mode<synchronous>, transform_indices = @transform_3, window_bounds = array<i64: 8, 32>}, {pipeline_mode = #tpu.pipeline_mode<synchronous>, transform_indices = @transform_4, window_bounds = array<i64: 200, 1>}, {transform_indices = @transform_5, window_bounds = array<i64: 8, 128>}]} {
    %c0 = arith.constant 0 : index
    %c0_0 = arith.constant 0 : index
    %0 = vector.load %arg1[%c0, %c0_0] : memref<16x128xf32, #tpu.memory_space<vmem>>, vector<16x128xf32>
    %c0_1 = arith.constant 0 : index
    %c0_2 = arith.constant 0 : index
    %1 = vector.load %arg2[%c0_1, %c0_2] : memref<32x16xf32, #tpu.memory_space<vmem>>, vector<32x16xf32>
    %c0_3 = arith.constant 0 : index
    %c0_4 = arith.constant 0 : index
    %2 = vector.load %arg3[%c0_3, %c0_4] : memref<32x32xf32, #tpu.memory_space<vmem>>, vector<32x32xf32>
    %c0_5 = arith.constant 0 : index
    %c0_6 = arith.constant 0 : index
    %3 = vector.load %arg4[%c0_5, %c0_6] : memref<8x32xf32, #tpu.memory_space<vmem>>, vector<8x32xf32>
    %c0_7 = arith.constant 0 : index
    %c0_8 = arith.constant 0 : index
    %4 = vector.load %arg5[%c0_7, %c0_8] : memref<200x1xf32, #tpu.memory_space<vmem>>, vector<200x1xf32>
    %5 = vector.extract_strided_slice %4 {offsets = [0, 0], sizes = [32, 1], strides = [1, 1]} : vector<200x1xf32> to vector<32x1xf32>
    %6 = vector.extract_strided_slice %4 {offsets = [32, 0], sizes = [32, 1], strides = [1, 1]} : vector<200x1xf32> to vector<32x1xf32>
    %7 = vector.extract_strided_slice %4 {offsets = [64, 0], sizes = [32, 1], strides = [1, 1]} : vector<200x1xf32> to vector<32x1xf32>
    %8 = vector.extract_strided_slice %4 {offsets = [96, 0], sizes = [32, 1], strides = [1, 1]} : vector<200x1xf32> to vector<32x1xf32>
    %9 = vector.extract_strided_slice %4 {offsets = [128, 0], sizes = [32, 1], strides = [1, 1]} : vector<200x1xf32> to vector<32x1xf32>
    %10 = vector.extract_strided_slice %4 {offsets = [160, 0], sizes = [32, 1], strides = [1, 1]} : vector<200x1xf32> to vector<32x1xf32>
    %11 = vector.extract_strided_slice %4 {offsets = [192, 0], sizes = [8, 1], strides = [1, 1]} : vector<200x1xf32> to vector<8x1xf32>
    %cst = arith.constant dense<0.000000e+00> : vector<32x128xf32>
    %12 = tpu.matmul %1, %0, %cst {dimension_numbers = #tpu.dot_dimension_numbers<[1], [0], [0], [1], [0, 0, 1, 1], [], []>} : vector<32x16xf32>, vector<16x128xf32>, vector<32x128xf32> -> vector<32x128xf32>
    %13 = vector.broadcast %5 : vector<32x1xf32> to vector<32x128xf32>
    %14 = arith.addf %12, %13 : vector<32x128xf32>
    %cst_9 = arith.constant dense<0.000000e+00> : vector<128xf32>
    %15 = vector.multi_reduction <add>, %14, %cst_9 [0] : vector<32x128xf32> to vector<128xf32>
    %16 = vector.shape_cast %15 : vector<128xf32> to vector<1x128xf32>
    %cst_10 = arith.constant 3.200000e+01 : f32
    %17 = vector.broadcast %cst_10 : f32 to vector<1x128xf32>
    %18 = arith.divf %16, %17 : vector<1x128xf32>
    %19 = vector.broadcast %18 : vector<1x128xf32> to vector<32x128xf32>
    %20 = arith.subf %14, %19 : vector<32x128xf32>
    %21 = arith.mulf %20, %20 : vector<32x128xf32>
    %cst_11 = arith.constant dense<0.000000e+00> : vector<128xf32>
    %22 = vector.multi_reduction <add>, %21, %cst_11 [0] : vector<32x128xf32> to vector<128xf32>
    %23 = vector.shape_cast %22 : vector<128xf32> to vector<1x128xf32>
    %cst_12 = arith.constant 3.200000e+01 : f32
    %24 = vector.broadcast %cst_12 : f32 to vector<1x128xf32>
    %25 = arith.divf %23, %24 : vector<1x128xf32>
    %cst_13 = arith.constant 9.99999974E-6 : f32
    %26 = vector.broadcast %cst_13 : f32 to vector<1x128xf32>
    %27 = arith.addf %25, %26 : vector<1x128xf32>
    %28 = math.rsqrt %27 : vector<1x128xf32>
    %29 = vector.broadcast %28 : vector<1x128xf32> to vector<32x128xf32>
    %30 = arith.mulf %20, %29 : vector<32x128xf32>
    %31 = vector.broadcast %6 : vector<32x1xf32> to vector<32x128xf32>
    %32 = arith.mulf %30, %31 : vector<32x128xf32>
    %33 = vector.broadcast %7 : vector<32x1xf32> to vector<32x128xf32>
    %34 = arith.addf %32, %33 : vector<32x128xf32>
    %cst_14 = arith.constant 0.000000e+00 : f32
    %35 = vector.broadcast %cst_14 : f32 to vector<32x128xf32>
    %36 = arith.maximumf %34, %35 : vector<32x128xf32>
    %cst_15 = arith.constant dense<0.000000e+00> : vector<32x128xf32>
    %37 = tpu.matmul %2, %36, %cst_15 {dimension_numbers = #tpu.dot_dimension_numbers<[1], [0], [0], [1], [0, 0, 1, 1], [], []>} : vector<32x32xf32>, vector<32x128xf32>, vector<32x128xf32> -> vector<32x128xf32>
    %38 = vector.broadcast %8 : vector<32x1xf32> to vector<32x128xf32>
    %39 = arith.addf %37, %38 : vector<32x128xf32>
    %cst_16 = arith.constant dense<0.000000e+00> : vector<128xf32>
    %40 = vector.multi_reduction <add>, %39, %cst_16 [0] : vector<32x128xf32> to vector<128xf32>
    %41 = vector.shape_cast %40 : vector<128xf32> to vector<1x128xf32>
    %cst_17 = arith.constant 3.200000e+01 : f32
    %42 = vector.broadcast %cst_17 : f32 to vector<1x128xf32>
    %43 = arith.divf %41, %42 : vector<1x128xf32>
    %44 = vector.broadcast %43 : vector<1x128xf32> to vector<32x128xf32>
    %45 = arith.subf %39, %44 : vector<32x128xf32>
    %46 = arith.mulf %45, %45 : vector<32x128xf32>
    %cst_18 = arith.constant dense<0.000000e+00> : vector<128xf32>
    %47 = vector.multi_reduction <add>, %46, %cst_18 [0] : vector<32x128xf32> to vector<128xf32>
    %48 = vector.shape_cast %47 : vector<128xf32> to vector<1x128xf32>
    %cst_19 = arith.constant 3.200000e+01 : f32
    %49 = vector.broadcast %cst_19 : f32 to vector<1x128xf32>
    %50 = arith.divf %48, %49 : vector<1x128xf32>
    %cst_20 = arith.constant 9.99999974E-6 : f32
    %51 = vector.broadcast %cst_20 : f32 to vector<1x128xf32>
    %52 = arith.addf %50, %51 : vector<1x128xf32>
    %53 = math.rsqrt %52 : vector<1x128xf32>
    %54 = vector.broadcast %53 : vector<1x128xf32> to vector<32x128xf32>
    %55 = arith.mulf %45, %54 : vector<32x128xf32>
    %56 = vector.broadcast %9 : vector<32x1xf32> to vector<32x128xf32>
    %57 = arith.mulf %55, %56 : vector<32x128xf32>
    %58 = vector.broadcast %10 : vector<32x1xf32> to vector<32x128xf32>
    %59 = arith.addf %57, %58 : vector<32x128xf32>
    %cst_21 = arith.constant 0.000000e+00 : f32
    %60 = vector.broadcast %cst_21 : f32 to vector<32x128xf32>
    %61 = arith.maximumf %59, %60 : vector<32x128xf32>
    %cst_22 = arith.constant dense<0.000000e+00> : vector<8x128xf32>
    %62 = tpu.matmul %3, %61, %cst_22 {dimension_numbers = #tpu.dot_dimension_numbers<[1], [0], [0], [1], [0, 0, 1, 1], [], []>} : vector<8x32xf32>, vector<32x128xf32>, vector<8x128xf32> -> vector<8x128xf32>
    %63 = vector.broadcast %11 : vector<8x1xf32> to vector<8x128xf32>
    %64 = arith.addf %62, %63 : vector<8x128xf32>
    %c0_23 = arith.constant 0 : index
    %c0_24 = arith.constant 0 : index
    %65 = vector.load %arg6[%c0_23, %c0_24] : memref<8x128xf32, #tpu.memory_space<vmem>>, vector<8x128xf32>
    tpu.vector_store %arg6[%c0_23, %c0_24], %64 {strides = array<i32>} : memref<8x128xf32, #tpu.memory_space<vmem>>, vector<8x128xf32>,
    return
  }
  func.func @transform_0(%arg0: i32) -> (i32, i32) {
    %c0_i32 = arith.constant 0 : i32
    %c0_i32_0 = arith.constant 0 : i32
    return %c0_i32, %arg0 : i32, i32
  }
  func.func @transform_1(%arg0: i32) -> (i32, i32) {
    %c0_i32 = arith.constant 0 : i32
    %c0_i32_0 = arith.constant 0 : i32
    %c0_i32_1 = arith.constant 0 : i32
    return %c0_i32, %c0_i32_0 : i32, i32
  }
  func.func @transform_2(%arg0: i32) -> (i32, i32) {
    %c0_i32 = arith.constant 0 : i32
    %c0_i32_0 = arith.constant 0 : i32
    %c0_i32_1 = arith.constant 0 : i32
    return %c0_i32, %c0_i32_0 : i32, i32
  }
  func.func @transform_3(%arg0: i32) -> (i32, i32) {
    %c0_i32 = arith.constant 0 : i32
    %c0_i32_0 = arith.constant 0 : i32
    %c0_i32_1 = arith.constant 0 : i32
    return %c0_i32, %c0_i32_0 : i32, i32
  }
  func.func @transform_4(%arg0: i32) -> (i32, i32) {
    %c0_i32 = arith.constant 0 : i32
    %c0_i32_0 = arith.constant 0 : i32
    %c0_i32_1 = arith.constant 0 : i32
    return %c0_i32, %c0_i32_0 : i32, i32
  }
  func.func @transform_5(%arg0: i32) -> (i32, i32) {
    %c0_i32 = arith.constant 0 : i32
    %c0_i32_0 = arith.constant 0 : i32
    return %c0_i32, %arg0 : i32, i32
  }
}

</mosaic_0001>

<llo_original>
// kernel: mlp_head_pallas.1
$region0: #{mlp_head_pallas.1}
  #allocation0 [shape = 'u32[]', space=smem, size = 0x4, offset = 0x4, fixed_abs, tag = 'smem constant byte address 0x4 - core index']
  #allocation1 [shape = 'u32[144,128]{1,0:T(1,128)}', space=vmem, size = 0x12000, scoped, tag = 'internal scratch']
  %s0 = inlined_call_operand.vmem [shape: f32[16,128], index: 0, kind: input, shape index: {}]
  %s1 = inlined_call_operand.vmem [shape: f32[32,16], index: 1, kind: input, shape index: {}]
  %s2 = inlined_call_operand.vmem [shape: f32[32,32], index: 2, kind: input, shape index: {}]
  %s3 = inlined_call_operand.vmem [shape: f32[8,32], index: 3, kind: input, shape index: {}]
  %s4 = inlined_call_operand.vmem [shape: f32[200,1], index: 4, kind: input, shape index: {}]
  %s5 = inlined_call_operand.vmem [shape: f32[8,128], index: 5, kind: output, shape index: {}]
  %s6 = sld [smem:[#allocation0]]
  $region30: #{mlp_head_pallas.1} parent=0
    _
  %s8 = ssub.s32 1, %s6
  %s9 = scalar_select 0, %s8, %s6
  // Predicated region
  $region2: #{mlp_head_pallas.1} parent=0 // pred_check
    _
  $region3: #{mlp_head_pallas.1} parent=0 // pred_check_branch
    %11 = sbr.rel (0) target = $region5
  $region4: #{mlp_head_pallas.1} parent=0 // pred_region
    _
  $region5: #{mlp_head_pallas.1} parent=0 // pred_fallthru
    _
  // Predicated region
  $region6: #{mlp_head_pallas.1} parent=0 // pred_check
    _
  $region7: #{mlp_head_pallas.1} parent=0 // pred_check_branch
    %13 = sbr.rel (0) target = $region9
  $region8: #{mlp_head_pallas.1} parent=0 // pred_region
    _
  $region9: #{mlp_head_pallas.1} parent=0 // pred_fallthru
    _
  // Predicated region
  $region10: #{mlp_head_pallas.1} parent=0 // pred_check
    _
  $region11: #{mlp_head_pallas.1} parent=0 // pred_check_branch
    %15 = sbr.rel (0) target = $region13
  $region12: #{mlp_head_pallas.1} parent=0 // pred_region
    _
  $region13: #{mlp_head_pallas.1} parent=0 // pred_fallthru
    _
  // Predicated region
  $region14: #{mlp_head_pallas.1} parent=0 // pred_check
    _
  $region15: #{mlp_head_pallas.1} parent=0 // pred_check_branch
    %17 = sbr.rel (0) target = $region17
  $region16: #{mlp_head_pallas.1} parent=0 // pred_region
    _
  $region17: #{mlp_head_pallas.1} parent=0 // pred_fallthru
    _
  // Predicated region
  $region18: #{mlp_head_pallas.1} parent=0 // pred_check
    _
  $region19: #{mlp_head_pallas.1} parent=0 // pred_check_branch
    %19 = sbr.rel (0) target = $region21
  $region20: #{mlp_head_pallas.1} parent=0 // pred_region
    _
  $region21: #{mlp_head_pallas.1} parent=0 // pred_fallthru
    _
  %v20 = vld [vmem:[%s0] sm:$0xff]
  %v21 = vld [vmem:[%s0 + $0x8] sm:$0xff]
  %v22 = vld [vmem:[%s1] sm:$0xff]
  %v23 = vld [vmem:[%s1 + $0x8] sm:$0xff]
  %v24 = vld [vmem:[%s1 + $0x10] sm:$0xff]
  %v25 = vld [vmem:[%s1 + $0x18] sm:$0xff]
  %v26 = vld [vmem:[%s2] sm:$0xff]
  %v27 = vld [vmem:[%s2 + $0x8] sm:$0xff]
  %v28 = vld [vmem:[%s2 + $0x10] sm:$0xff]
  %v29 = vld [vmem:[%s2 + $0x18] sm:$0xff]
  %v30 = vld [vmem:[%s3] sm:$0xff]
  %v31 = vld [vmem:[%s4] sm:$0xff]
  %v32 = vld [vmem:[%s4 + $0x8] sm:$0xff]
  %v33 = vld [vmem:[%s4 + $0x10] sm:$0xff]
  %v34 = vld [vmem:[%s4 + $0x18] sm:$0xff]
  %v35 = vld [vmem:[%s4 + $0x20] sm:$0xff]
  %v36 = vld [vmem:[%s4 + $0x28] sm:$0xff]
  %v37 = vld [vmem:[%s4 + $0x30] sm:$0xff]
  %v38 = vld [vmem:[%s4 + $0x38] sm:$0xff]
  %v39 = vld [vmem:[%s4 + $0x40] sm:$0xff]
  %v40 = vld [vmem:[%s4 + $0x48] sm:$0xff]
  %v41 = vld [vmem:[%s4 + $0x50] sm:$0xff]
  %v42 = vld [vmem:[%s4 + $0x58] sm:$0xff]
  %v43 = vld [vmem:[%s4 + $0x60] sm:$0xff]
  %v44 = vld [vmem:[%s4 + $0x68] sm:$0xff]
  %v45 = vld [vmem:[%s4 + $0x70] sm:$0xff]
  %v46 = vld [vmem:[%s4 + $0x78] sm:$0xff]
  %v47 = vld [vmem:[%s4 + $0x80] sm:$0xff]
  %v48 = vld [vmem:[%s4 + $0x88] sm:$0xff]
  %v49 = vld [vmem:[%s4 + $0x90] sm:$0xff]
  %v50 = vld [vmem:[%s4 + $0x98] sm:$0xff]
  %v51 = vld [vmem:[%s4 + $0xa0] sm:$0xff]
  %v52 = vld [vmem:[%s4 + $0xa8] sm:$0xff]
  %v53 = vld [vmem:[%s4 + $0xb0] sm:$0xff]
  %v54 = vld [vmem:[%s4 + $0xb8] sm:$0xff]
  %v55 = vld [vmem:[%s4 + $0xc0] sm:$0xff]
  %57 = vset.pattern.permute.xlu0 0
  %58 = vperm.xlu0 %57, %v31
  %v59 = vpop.permute.xlu0 %58
  %62 = vset.pattern.permute.xlu0 0
  %63 = vperm.xlu0 %62, %v32
  %v64 = vpop.permute.xlu0 %63
  %67 = vset.pattern.permute.xlu0 0
  %68 = vperm.xlu0 %67, %v33
  %v69 = vpop.permute.xlu0 %68
  %72 = vset.pattern.permute.xlu0 0
  %73 = vperm.xlu0 %72, %v34
  %v74 = vpop.permute.xlu0 %73
  %vm76 = vcmask 130048
  %v78 = vsel %vm76, %v22, 0
  %v81 = vsel %vm76, %v23, 0
  %v84 = vsel %vm76, %v24, 0
  %v87 = vsel %vm76, %v25, 0
  %89 = vmatprep.subr.mxu0 0.0
  %90 = vmatpush1.msra.mxu0 %v20
  %91 = vmatprep.subr.mxu0 0.0
  %92 = vmatpush1.msra.mxu0 %v21
  %93 = vmatprep.subr.mxu0 0.0
  %94 = vmatpush1.msra.mxu0 0.0
  %95 = vmatprep.subr.mxu0 0.0
  %96 = vmatpush1.msra.mxu0 0.0
  %97 = vmatprep.subr.mxu0 0.0
  %98 = vmatpush1.msra.mxu0 0.0
  %99 = vmatprep.subr.mxu0 0.0
  %100 = vmatpush1.msra.mxu0 0.0
  %101 = vmatprep.subr.mxu0 0.0
  %102 = vmatpush1.msra.mxu0 0.0
  %103 = vmatprep.subr.mxu0 0.0
  %104 = vmatpush1.msra.mxu0 0.0
  %105 = vmatprep.subr.mxu0 0.0
  %106 = vmatpush1.msra.mxu0 0.0
  %107 = vmatprep.subr.mxu0 0.0
  %108 = vmatpush1.msra.mxu0 0.0
  %109 = vmatprep.subr.mxu0 0.0
  %110 = vmatpush1.msra.mxu0 0.0
  %111 = vmatprep.subr.mxu0 0.0
  %112 = vmatpush1.msra.mxu0 0.0
  %113 = vmatprep.subr.mxu0 0.0
  %114 = vmatpush1.msra.mxu0 0.0
  %115 = vmatprep.subr.mxu0 0.0
  %116 = vmatpush1.msra.mxu0 0.0
  %117 = vmatprep.subr.mxu0 0.0
  %118 = vmatpush1.msra.mxu0 0.0
  %119 = vmatprep.subr.mxu0 0.0
  %120 = vmatpush1.msra.mxu0 0.0
  %121 = vmatprep.subr.mxu0 0.0
  %122 = vmatpush1.msra.mxu0 0.0
  %123 = vmatprep.subr.mxu0 0.0
  %124 = vmatpush1.msra.mxu0 0.0
  %125 = vmatprep.subr.mxu0 0.0
  %126 = vmatpush1.msra.mxu0 0.0
  %127 = vmatprep.subr.mxu0 0.0
  %128 = vmatpush1.msra.mxu0 0.0
  %129 = vmatprep.subr.mxu0 0.0
  %130 = vmatpush1.msra.mxu0 0.0
  %131 = vmatprep.subr.mxu0 0.0
  %132 = vmatpush1.msra.mxu0 0.0
  %133 = vmatprep.subr.mxu0 0.0
  %134 = vmatpush1.msra.mxu0 0.0
  %135 = vmatprep.subr.mxu0 0.0
  %136 = vmatpush1.msra.mxu0 0.0
  %137 = vmatprep.subr.mxu0 0.0
  %138 = vmatpush1.msra.mxu0 0.0
  %139 = vmatprep.subr.mxu0 0.0
  %140 = vmatpush1.msra.mxu0 0.0
  %141 = vmatprep.subr.mxu0 0.0
  %142 = vmatpush1.msra.mxu0 0.0
  %143 = vmatprep.subr.mxu0 0.0
  %144 = vmatpush1.msra.mxu0 0.0
  %145 = vmatprep.subr.mxu0 0.0
  %146 = vmatpush1.msra.mxu0 0.0
  %147 = vmatprep.subr.mxu0 0.0
  %148 = vmatpush1.msra.mxu0 0.0
  %149 = vmatprep.subr.mxu0 0.0
  %150 = vmatpush1.msra.mxu0 0.0
  %151 = vmatprep.subr.mxu0 0.0
  %152 = vmatpush1.msra.mxu0 0.0
  %153 = vmatprep.mubr.f32.mxu0 0.0
  %154 = vmatmul.mubr.f32.gmra.mrb[0].mxu0 %v78
  %v155 = vpop.f32.mrb[0].mxu0
  %v156 = vadd.f32 %v59, %v155
  %v157 = vpop.f32.mrb[0].mxu0
  %158 = vmatprep.mubr.f32.mxu0 0.0
  %159 = vmatmul.mubr.f32.gmra.mrb[0].mxu0 %v81
  %v160 = vpop.f32.mrb[0].mxu0
  %v161 = vadd.f32 %v64, %v160
  %v162 = vpop.f32.mrb[0].mxu0
  %163 = vmatprep.mubr.f32.mxu0 0.0
  %164 = vmatmul.mubr.f32.gmra.mrb[0].mxu0 %v84
  %v165 = vpop.f32.mrb[0].mxu0
  %v166 = vadd.f32 %v69, %v165
  %v167 = vpop.f32.mrb[0].mxu0
  %168 = vmatprep.mubr.f32.mxu0 0.0
  %169 = vmatmul.mubr.f32.gmra.mrb[0].mxu0 %v87
  %v170 = vpop.f32.mrb[0].mxu0
  %v171 = vadd.f32 %v74, %v170
  %v172 = vpop.f32.mrb[0].mxu0
  %173 = vdwg.mxu0
  %v174 = vadd.f32 %v156, %v161
  %v175 = vadd.f32 %v174, %v166
  %v176 = vadd.f32 %v175, %v171
  %v177 = vrot.slane %v176, 4
  %v178 = vadd.f32 %v176, %v177
  %v179 = vrot.slane %v178, 2
  %v180 = vadd.f32 %v178, %v179
  %v181 = vrot.slane %v180, 1
  %v182 = vadd.f32 %v180, %v181
  %v183 = vrcp.pop 32.0
  %v184 = vmul.f32 %v182, %v183
  %v185 = vsub.f32 %v156, %v184
  %v186 = vsub.f32 %v161, %v184
  %v187 = vsub.f32 %v166, %v184
  %v188 = vsub.f32 %v171, %v184
  %v189 = vmul.f32 %v185, %v185
  %v190 = vmul.f32 %v186, %v186
  %v191 = vmul.f32 %v187, %v187
  %v192 = vmul.f32 %v188, %v188
  %v193 = vadd.f32 %v189, %v190
  %v194 = vadd.f32 %v193, %v191
  %v195 = vadd.f32 %v194, %v192
  %v196 = vrot.slane %v195, 4
  %v197 = vadd.f32 %v195, %v196
  %v198 = vrot.slane %v197, 2
  %v199 = vadd.f32 %v197, %v198
  %v200 = vrot.slane %v199, 1
  %v201 = vadd.f32 %v199, %v200
  %v202 = vmul.f32 %v201, %v183
  %v203 = vadd.f32 %v202, 1e-05
  %v204 = vrsqrt.pop %v203
  %v205 = vmul.f32 %v185, %v204
  %v206 = vmul.f32 %v186, %v204
  %v207 = vmul.f32 %v187, %v204
  %v208 = vmul.f32 %v188, %v204
  %210 = vset.pattern.permute.xlu0 0
  %211 = vperm.xlu0 %210, %v35
  %v212 = vpop.permute.xlu0 %211
  %215 = vset.pattern.permute.xlu0 0
  %216 = vperm.xlu0 %215, %v36
  %v217 = vpop.permute.xlu0 %216
  %220 = vset.pattern.permute.xlu0 0
  %221 = vperm.xlu0 %220, %v37
  %v222 = vpop.permute.xlu0 %221
  %225 = vset.pattern.permute.xlu0 0
  %226 = vperm.xlu0 %225, %v38
  %v227 = vpop.permute.xlu0 %226
  %v229 = vmul.f32 %v205, %v212
  %v230 = vmul.f32 %v206, %v217
  %v231 = vmul.f32 %v207, %v222
  %v232 = vmul.f32 %v208, %v227
  %234 = vset.pattern.permute.xlu0 0
  %235 = vperm.xlu0 %234, %v39
  %v236 = vpop.permute.xlu0 %235
  %239 = vset.pattern.permute.xlu0 0
  %240 = vperm.xlu0 %239, %v40
  %v241 = vpop.permute.xlu0 %240
  %244 = vset.pattern.permute.xlu0 0
  %245 = vperm.xlu0 %244, %v41
  %v246 = vpop.permute.xlu0 %245
  %249 = vset.pattern.permute.xlu0 0
  %250 = vperm.xlu0 %249, %v42
  %v251 = vpop.permute.xlu0 %250
  %v253 = vadd.f32 %v229, %v236
  %v254 = vadd.f32 %v230, %v241
  %v255 = vadd.f32 %v231, %v246
  %v256 = vadd.f32 %v232, %v251
  %v257 = vmax.f32 %v253, 0.0
  %v258 = vmax.f32 %v254, 0.0
  %v259 = vmax.f32 %v255, 0.0
  %v260 = vmax.f32 %v256, 0.0
  %262 = vset.pattern.permute.xlu0 0
  %263 = vperm.xlu0 %262, %v43
  %v264 = vpop.permute.xlu0 %263
  %267 = vset.pattern.permute.xlu0 0
  %268 = vperm.xlu0 %267, %v44
  %v269 = vpop.permute.xlu0 %268
  %272 = vset.pattern.permute.xlu0 0
  %273 = vperm.xlu0 %272, %v45
  %v274 = vpop.permute.xlu0 %273
  %277 = vset.pattern.permute.xlu0 0
  %278 = vperm.xlu0 %277, %v46
  %v279 = vpop.permute.xlu0 %278
  %vm281 = vcmask 261120
  %v283 = vsel %vm281, %v26, 0
  %v286 = vsel %vm281, %v27, 0
  %v289 = vsel %vm281, %v28, 0
  %v292 = vsel %vm281, %v29, 0
  %294 = vmatprep.subr.mxu0 0.0
  %295 = vmatpush1.msra.mxu0 %v257
  %296 = vmatprep.subr.mxu0 0.0
  %297 = vmatpush1.msra.mxu0 %v258
  %298 = vmatprep.subr.mxu0 0.0
  %299 = vmatpush1.msra.mxu0 %v259
  %300 = vmatprep.subr.mxu0 0.0
  %301 = vmatpush1.msra.mxu0 %v260
  %302 = vmatprep.subr.mxu0 0.0
  %303 = vmatpush1.msra.mxu0 0.0
  %304 = vmatprep.subr.mxu0 0.0
  %305 = vmatpush1.msra.mxu0 0.0
  %306 = vmatprep.subr.mxu0 0.0
  %307 = vmatpush1.msra.mxu0 0.0
  %308 = vmatprep.subr.mxu0 0.0
  %309 = vmatpush1.msra.mxu0 0.0
  %310 = vmatprep.subr.mxu0 0.0
  %311 = vmatpush1.msra.mxu0 0.0
  %312 = vmatprep.subr.mxu0 0.0
  %313 = vmatpush1.msra.mxu0 0.0
  %314 = vmatprep.subr.mxu0 0.0
  %315 = vmatpush1.msra.mxu0 0.0
  %316 = vmatprep.subr.mxu0 0.0
  %317 = vmatpush1.msra.mxu0 0.0
  %318 = vmatprep.subr.mxu0 0.0
  %319 = vmatpush1.msra.mxu0 0.0
  %320 = vmatprep.subr.mxu0 0.0
  %321 = vmatpush1.msra.mxu0 0.0
  %322 = vmatprep.subr.mxu0 0.0
  %323 = vmatpush1.msra.mxu0 0.0
  %324 = vmatprep.subr.mxu0 0.0
  %325 = vmatpush1.msra.mxu0 0.0
  %326 = vmatprep.subr.mxu0 0.0
  %327 = vmatpush1.msra.mxu0 0.0
  %328 = vmatprep.subr.mxu0 0.0
  %329 = vmatpush1.msra.mxu0 0.0
  %330 = vmatprep.subr.mxu0 0.0
  %331 = vmatpush1.msra.mxu0 0.0
  %332 = vmatprep.subr.mxu0 0.0
  %333 = vmatpush1.msra.mxu0 0.0
  %334 = vmatprep.subr.mxu0 0.0
  %335 = vmatpush1.msra.mxu0 0.0
  %336 = vmatprep.subr.mxu0 0.0
  %337 = vmatpush1.msra.mxu0 0.0
  %338 = vmatprep.subr.mxu0 0.0
  %339 = vmatpush1.msra.mxu0 0.0
  %340 = vmatprep.subr.mxu0 0.0
  %341 = vmatpush1.msra.mxu0 0.0
  %342 = vmatprep.subr.mxu0 0.0
  %343 = vmatpush1.msra.mxu0 0.0
  %344 = vmatprep.subr.mxu0 0.0
  %345 = vmatpush1.msra.mxu0 0.0
  %346 = vmatprep.subr.mxu0 0.0
  %347 = vmatpush1.msra.mxu0 0.0
  %348 = vmatprep.subr.mxu0 0.0
  %349 = vmatpush1.msra.mxu0 0.0
  %350 = vmatprep.subr.mxu0 0.0
  %351 = vmatpush1.msra.mxu0 0.0
  %352 = vmatprep.subr.mxu0 0.0
  %353 = vmatpush1.msra.mxu0 0.0
  %354 = vmatprep.subr.mxu0 0.0
  %355 = vmatpush1.msra.mxu0 0.0
  %356 = vmatprep.subr.mxu0 0.0
  %357 = vmatpush1.msra.mxu0 0.0
  %358 = vmatprep.mubr.f32.mxu0 0.0
  %359 = vmatmul.mubr.f32.gmra.mrb[0].mxu0 %v283
  %v360 = vpop.f32.mrb[0].mxu0
  %v361 = vadd.f32 %v264, %v360
  %v362 = vpop.f32.mrb[0].mxu0
  %363 = vmatprep.mubr.f32.mxu0 0.0
  %364 = vmatmul.mubr.f32.gmra.mrb[0].mxu0 %v286
  %v365 = vpop.f32.mrb[0].mxu0
  %v366 = vadd.f32 %v269, %v365
  %v367 = vpop.f32.mrb[0].mxu0
  %368 = vmatprep.mubr.f32.mxu0 0.0
  %369 = vmatmul.mubr.f32.gmra.mrb[0].mxu0 %v289
  %v370 = vpop.f32.mrb[0].mxu0
  %v371 = vadd.f32 %v274, %v370
  %v372 = vpop.f32.mrb[0].mxu0
  %373 = vmatprep.mubr.f32.mxu0 0.0
  %374 = vmatmul.mubr.f32.gmra.mrb[0].mxu0 %v292
  %v375 = vpop.f32.mrb[0].mxu0
  %v376 = vadd.f32 %v279, %v375
  %v377 = vpop.f32.mrb[0].mxu0
  %378 = vdwg.mxu0
  %v379 = vadd.f32 %v361, %v366
  %v380 = vadd.f32 %v379, %v371
  %v381 = vadd.f32 %v380, %v376
  %v382 = vrot.slane %v381, 4
  %v383 = vadd.f32 %v381, %v382
  %v384 = vrot.slane %v383, 2
  %v385 = vadd.f32 %v383, %v384
  %v386 = vrot.slane %v385, 1
  %v387 = vadd.f32 %v385, %v386
  %v388 = vmul.f32 %v387, %v183
  %v389 = vsub.f32 %v361, %v388
  %v390 = vsub.f32 %v366, %v388
  %v391 = vsub.f32 %v371, %v388
  %v392 = vsub.f32 %v376, %v388
  %v393 = vmul.f32 %v389, %v389
  %v394 = vmul.f32 %v390, %v390
  %v395 = vmul.f32 %v391, %v391
  %v396 = vmul.f32 %v392, %v392
  %v397 = vadd.f32 %v393, %v394
  %v398 = vadd.f32 %v397, %v395
  %v399 = vadd.f32 %v398, %v396
  %v400 = vrot.slane %v399, 4
  %v401 = vadd.f32 %v399, %v400
  %v402 = vrot.slane %v401, 2
  %v403 = vadd.f32 %v401, %v402
  %v404 = vrot.slane %v403, 1
  %v405 = vadd.f32 %v403, %v404
  %v406 = vmul.f32 %v405, %v183
  %v407 = vadd.f32 %v406, 1e-05
  %v408 = vrsqrt.pop %v407
  %v409 = vmul.f32 %v389, %v408
  %v410 = vmul.f32 %v390, %v408
  %v411 = vmul.f32 %v391, %v408
  %v412 = vmul.f32 %v392, %v408
  %414 = vset.pattern.permute.xlu0 0
  %415 = vperm.xlu0 %414, %v47
  %v416 = vpop.permute.xlu0 %415
  %419 = vset.pattern.permute.xlu0 0
  %420 = vperm.xlu0 %419, %v48
  %v421 = vpop.permute.xlu0 %420
  %424 = vset.pattern.permute.xlu0 0
  %425 = vperm.xlu0 %424, %v49
  %v426 = vpop.permute.xlu0 %425
  %429 = vset.pattern.permute.xlu0 0
  %430 = vperm.xlu0 %429, %v50
  %v431 = vpop.permute.xlu0 %430
  %v433 = vmul.f32 %v409, %v416
  %v434 = vmul.f32 %v410, %v421
  %v435 = vmul.f32 %v411, %v426
  %v436 = vmul.f32 %v412, %v431
  %438 = vset.pattern.permute.xlu0 0
  %439 = vperm.xlu0 %438, %v51
  %v440 = vpop.permute.xlu0 %439
  %443 = vset.pattern.permute.xlu0 0
  %444 = vperm.xlu0 %443, %v52
  %v445 = vpop.permute.xlu0 %444
  %448 = vset.pattern.permute.xlu0 0
  %449 = vperm.xlu0 %448, %v53
  %v450 = vpop.permute.xlu0 %449
  %453 = vset.pattern.permute.xlu0 0
  %454 = vperm.xlu0 %453, %v54
  %v455 = vpop.permute.xlu0 %454
  %v457 = vadd.f32 %v433, %v440
  %v458 = vadd.f32 %v434, %v445
  %v459 = vadd.f32 %v435, %v450
  %v460 = vadd.f32 %v436, %v455
  %v461 = vmax.f32 %v457, 0.0
  %v462 = vmax.f32 %v458, 0.0
  %v463 = vmax.f32 %v459, 0.0
  %v464 = vmax.f32 %v460, 0.0
  %466 = vset.pattern.permute.xlu0 0
  %467 = vperm.xlu0 %466, %v55
  %v468 = vpop.permute.xlu0 %467
  %v471 = vsel %vm281, %v30, 0
  %473 = vmatprep.subr.mxu0 0.0
  %474 = vmatpush1.msra.mxu0 %v461
  %475 = vmatprep.subr.mxu0 0.0
  %476 = vmatpush1.msra.mxu0 %v462
  %477 = vmatprep.subr.mxu0 0.0
  %478 = vmatpush1.msra.mxu0 %v463
  %479 = vmatprep.subr.mxu0 0.0
  %480 = vmatpush1.msra.mxu0 %v464
  %481 = vmatprep.subr.mxu0 0.0
  %482 = vmatpush1.msra.mxu0 0.0
  %483 = vmatprep.subr.mxu0 0.0
  %484 = vmatpush1.msra.mxu0 0.0
  %485 = vmatprep.subr.mxu0 0.0
  %486 = vmatpush1.msra.mxu0 0.0
  %487 = vmatprep.subr.mxu0 0.0
  %488 = vmatpush1.msra.mxu0 0.0
  %489 = vmatprep.subr.mxu0 0.0
  %490 = vmatpush1.msra.mxu0 0.0
  %491 = vmatprep.subr.mxu0 0.0
  %492 = vmatpush1.msra.mxu0 0.0
  %493 = vmatprep.subr.mxu0 0.0
  %494 = vmatpush1.msra.mxu0 0.0
  %495 = vmatprep.subr.mxu0 0.0
  %496 = vmatpush1.msra.mxu0 0.0
  %497 = vmatprep.subr.mxu0 0.0
  %498 = vmatpush1.msra.mxu0 0.0
  %499 = vmatprep.subr.mxu0 0.0
  %500 = vmatpush1.msra.mxu0 0.0
  %501 = vmatprep.subr.mxu0 0.0
  %502 = vmatpush1.msra.mxu0 0.0
  %503 = vmatprep.subr.mxu0 0.0
  %504 = vmatpush1.msra.mxu0 0.0
  %505 = vmatprep.subr.mxu0 0.0
  %506 = vmatpush1.msra.mxu0 0.0
  %507 = vmatprep.subr.mxu0 0.0
  %508 = vmatpush1.msra.mxu0 0.0
  %509 = vmatprep.subr.mxu0 0.0
  %510 = vmatpush1.msra.mxu0 0.0
  %511 = vmatprep.subr.mxu0 0.0
  %512 = vmatpush1.msra.mxu0 0.0
  %513 = vmatprep.subr.mxu0 0.0
  %514 = vmatpush1.msra.mxu0 0.0
  %515 = vmatprep.subr.mxu0 0.0
  %516 = vmatpush1.msra.mxu0 0.0
  %517 = vmatprep.subr.mxu0 0.0
  %518 = vmatpush1.msra.mxu0 0.0
  %519 = vmatprep.subr.mxu0 0.0
  %520 = vmatpush1.msra.mxu0 0.0
  %521 = vmatprep.subr.mxu0 0.0
  %522 = vmatpush1.msra.mxu0 0.0
  %523 = vmatprep.subr.mxu0 0.0
  %524 = vmatpush1.msra.mxu0 0.0
  %525 = vmatprep.subr.mxu0 0.0
  %526 = vmatpush1.msra.mxu0 0.0
  %527 = vmatprep.subr.mxu0 0.0
  %528 = vmatpush1.msra.mxu0 0.0
  %529 = vmatprep.subr.mxu0 0.0
  %530 = vmatpush1.msra.mxu0 0.0
  %531 = vmatprep.subr.mxu0 0.0
  %532 = vmatpush1.msra.mxu0 0.0
  %533 = vmatprep.subr.mxu0 0.0
  %534 = vmatpush1.msra.mxu0 0.0
  %535 = vmatprep.subr.mxu0 0.0
  %536 = vmatpush1.msra.mxu0 0.0
  %537 = vmatprep.mubr.f32.mxu0 0.0
  %538 = vmatmul.mubr.f32.gmra.mrb[0].mxu0 %v471
  %v539 = vpop.f32.mrb[0].mxu0
  %v540 = vadd.f32 %v468, %v539
  %v541 = vpop.f32.mrb[0].mxu0
  %542 = vdwg.mxu0
  %543 = vst [vmem:[%s5] sm:$0xff] %v540
  // Predicated region
  $region22: #{mlp_head_pallas.1} parent=0 // pred_check
    _
  $region23: #{mlp_head_pallas.1} parent=0 // pred_check_branch
    %545 = sbr.rel (0) target = $region25
  $region24: #{mlp_head_pallas.1} parent=0 // pred_region
    _
  $region25: #{mlp_head_pallas.1} parent=0 // pred_fallthru
    _
  // Predicated region
  $region26: #{mlp_head_pallas.1} parent=0 // pred_check
    _
  $region27: #{mlp_head_pallas.1} parent=0 // pred_check_branch
    %547 = sbr.rel (0) target = $region29
  $region28: #{mlp_head_pallas.1} parent=0 // pred_region
    _
  $region29: #{mlp_head_pallas.1} parent=0 // pred_fallthru
    _

</llo_original>
